<compile_context>
chip_gen: v7x
topology: tpu7x:2x2x1
jax: 0.10.0
libtpu: 0.0.40
codegen_flags: <defaults>
</compile_context>

<pallas_src>
import functools
import math

import jax
import jax.numpy as jnp
from jax.experimental import pallas as pl
from jax.experimental.pallas import tpu as pltpu


def _mha_kernel(x_ref, wq_ref, wk_ref, wv_ref, wo_ref, bo_ref, o_ref, acc_ref,
                *, block_b, num_tokens, neg_inf=-1e30):
    # x_ref: (rows, d_in) with rows = block_b * num_tokens, compute dtype (bf16).
    # wq/wk/wv_ref: (1, d_in, head_dim) -- this head's projection weights.
    # wo_ref: (1, head_dim, d_out) -- this head's slice of the output proj.
    h = pl.program_id(1)

    @pl.when(h == 0)
    def _():
        acc_ref[...] = jnp.zeros_like(acc_ref)

    cdt = x_ref.dtype
    x2 = x_ref[...]                                                  # (rows, d_in)

    # Per-head projections; softmax scale is already folded into wq (wrapper).
    q2 = jnp.dot(x2, wq_ref[0], preferred_element_type=jnp.float32)  # (rows, hd)
    k2 = jnp.dot(x2, wk_ref[0], preferred_element_type=jnp.float32)
    v2 = jnp.dot(x2, wv_ref[0], preferred_element_type=jnp.float32)

    hd = q2.shape[-1]
    qh = q2.astype(cdt).reshape(block_b, num_tokens, hd)
    kh = k2.astype(cdt).reshape(block_b, num_tokens, hd)
    vh = v2.astype(cdt).reshape(block_b, num_tokens, hd)

    # Scores per batch element for this head (no cross-batch work): (bb, T, T).
    s = jnp.einsum('bqd,bkd->bqk', qh, kh, preferred_element_type=jnp.float32)

    # In-kernel causal mask (additive, f32): allowed iff key_pos <= query_pos.
    qi = jax.lax.broadcasted_iota(jnp.int32, (num_tokens, num_tokens), 0)
    ki = jax.lax.broadcasted_iota(jnp.int32, (num_tokens, num_tokens), 1)
    s = s + jnp.where(ki <= qi, jnp.float32(0.0), jnp.float32(neg_inf))

    # Numerically stable softmax along keys, in f32 (v5e has no bf16 VPU/EUP).
    # TODO(synk): on v6e/v7x, exp on bf16 (after f32 mask + max-subtract)
    # roughly doubles EUP throughput and halves p's footprint.
    s = s - jnp.max(s, axis=-1, keepdims=True)
    p = jnp.exp(s)
    p = p * pl.reciprocal(jnp.sum(p, axis=-1, keepdims=True), approx=True)
    # TODO(synk): attention dropout is identity at inference (p=0 / eval mode);
    # training-time stochastic dropout omitted.

    ctx = jnp.einsum('bqk,bkd->bqd', p.astype(cdt), vh,
                     preferred_element_type=jnp.float32)             # (bb, T, hd)
    ctx2 = ctx.astype(cdt).reshape(block_b * num_tokens, hd)

    # Fused head-concat + output projection: accumulate ctx_h @ Wo_h across the
    # head grid axis in the f32 scratch (no (H, rows, d_out) intermediate).
    acc_ref[...] += jnp.dot(ctx2, wo_ref[0], preferred_element_type=jnp.float32)

    @pl.when(h == pl.num_programs(1) - 1)
    def _():
        o_ref[...] = (acc_ref[...] + bo_ref[...]).astype(o_ref.dtype)


def _pick_block_b(batch, seq, max_rows=256, min_parallel_steps=2):
    """Largest divisor of `batch` with block_b*seq <= max_rows rows per step.

    Keeps >= min_parallel_steps batch ("parallel") steps when batch allows, so
    both v7x TensorCores get work.  (On single-TC v5e/v6e this constraint could
    be dropped to grow tiles further; the head grid axis already amortizes the
    per-step overhead, so the cost is small.)
    """
    best = 1
    for cand in range(1, batch + 1):
        if batch % cand:
            continue
        if cand * seq > max(max_rows, seq):
            continue
        if batch >= min_parallel_steps and batch // cand < min_parallel_steps:
            continue
        best = cand
    return best


def multi_head_attention(x, wq, wk, wv, wo, bo, *, num_heads,
                         block_b=None, compute_dtype=jnp.bfloat16):
    """x: (B, T, d_in); wq/wk/wv: (d_in, d_out); wo: (d_out, d_out); bo: (d_out,)."""
    b, num_tokens, d_in = x.shape
    d_out = wq.shape[1]
    assert d_out % num_heads == 0
    head_dim = d_out // num_heads

    if block_b is None:
        block_b = _pick_block_b(b, num_tokens)
    assert b % block_b == 0
    rows = block_b * num_tokens                     # rows per grid step
    n_batch_blocks = b // block_b
    # Tiled dims must satisfy the (8, 128) rule unless they span the full array.
    assert n_batch_blocks == 1 or rows % 8 == 0, (
        "block_b * num_tokens must be a multiple of 8 when the batch is tiled")
    grid = (n_batch_blocks, num_heads)              # heads last = reduction axis

    scale = 1.0 / math.sqrt(head_dim)

    # Wrapper-side layout plumbing (cheap one-time XLA ops):
    x_flat = x.reshape(b * num_tokens, d_in).astype(compute_dtype)
    # Head-major weights; softmax scale folded into W_query.
    wq_h = (wq * scale).reshape(d_in, num_heads, head_dim).transpose(1, 0, 2)
    wk_h = wk.reshape(d_in, num_heads, head_dim).transpose(1, 0, 2)
    wv_h = wv.reshape(d_in, num_heads, head_dim).transpose(1, 0, 2)
    wq_h = wq_h.astype(compute_dtype)
    wk_h = wk_h.astype(compute_dtype)
    wv_h = wv_h.astype(compute_dtype)
    wo_h = wo.reshape(num_heads, head_dim, d_out).astype(compute_dtype)
    bo2 = bo.reshape(1, d_out).astype(jnp.float32)

    kernel = functools.partial(
        _mha_kernel, block_b=block_b, num_tokens=num_tokens)

    out_flat = pl.pallas_call(
        kernel,
        out_shape=jax.ShapeDtypeStruct((b * num_tokens, d_out), x.dtype),
        grid_spec=pltpu.PrefetchScalarGridSpec(
            num_scalar_prefetch=0,
            grid=grid,
            in_specs=[
                pl.BlockSpec((rows, d_in), lambda i, h: (i, 0)),
                pl.BlockSpec((1, d_in, head_dim), lambda i, h: (h, 0, 0)),
                pl.BlockSpec((1, d_in, head_dim), lambda i, h: (h, 0, 0)),
                pl.BlockSpec((1, d_in, head_dim), lambda i, h: (h, 0, 0)),
                pl.BlockSpec((1, head_dim, d_out), lambda i, h: (h, 0, 0)),
                pl.BlockSpec((1, d_out), lambda i, h: (0, 0)),
            ],
            out_specs=pl.BlockSpec((rows, d_out), lambda i, h: (i, 0)),
            scratch_shapes=[pltpu.VMEM((rows, d_out), jnp.float32)],
        ),
        compiler_params=pltpu.CompilerParams(
            dimension_semantics=("parallel", "arbitrary"),
            vmem_limit_bytes=48 * 1024 * 1024,
        ),
    )(x_flat, wq_h, wk_h, wv_h, wo_h, bo2)

    return out_flat.reshape(b, num_tokens, d_out)


def _reference(x, wq, wk, wv, wo, bo, *, num_heads):
    """Pure-JAX f32 reference mirroring the PyTorch forward."""
    b, t, d_in = x.shape
    d_out = wq.shape[1]
    hd = d_out // num_heads
    q = (x @ wq).reshape(b, t, num_heads, hd).transpose(0, 2, 1, 3)
    k = (x @ wk).reshape(b, t, num_heads, hd).transpose(0, 2, 1, 3)
    v = (x @ wv).reshape(b, t, num_heads, hd).transpose(0, 2, 1, 3)
    scores = jnp.einsum("bhqd,bhkd->bhqk", q, k)
    mask = jnp.triu(jnp.ones((t, t), dtype=bool), k=1)
    scores = jnp.where(mask[None, None], -jnp.inf, scores)
    w = jax.nn.softmax(scores / math.sqrt(hd), axis=-1)
    ctx = jnp.einsum("bhqk,bhkd->bhqd", w, v).transpose(0, 2, 1, 3).reshape(b, t, d_out)
    return ctx @ wo + bo


if __name__ == "__main__":
    # Small shapes consistent with the module: batch=4, seq=8, d_in=32,
    # d_out=32, num_heads=4 (context_length >= seq, dropout=0.0, qkv_bias=False).
    # block_b=2 -> grid (2 parallel batch steps, 4 head accumulation steps).
    B, T, D_IN, D_OUT, H = 4, 8, 32, 32, 4

    key = jax.random.PRNGKey(0)
    kx, kq, kk, kv, ko, kb = jax.random.split(key, 6)
    x = jax.random.normal(kx, (B, T, D_IN), dtype=jnp.float32)
    wq = jax.random.normal(kq, (D_IN, D_OUT), dtype=jnp.float32) * 0.05
    wk = jax.random.normal(kk, (D_IN, D_OUT), dtype=jnp.float32) * 0.05
    wv = jax.random.normal(kv, (D_IN, D_OUT), dtype=jnp.float32) * 0.05
    wo = jax.random.normal(ko, (D_OUT, D_OUT), dtype=jnp.float32) * 0.05
    bo = jax.random.normal(kb, (D_OUT,), dtype=jnp.float32) * 0.05

    out = multi_head_attention(x, wq, wk, wv, wo, bo, num_heads=H)
    out = jax.block_until_ready(out)

    ref = _reference(x, wq, wk, wv, wo, bo, num_heads=H)
    assert out.shape == (B, T, D_OUT)
    # bf16 matmul operands + approx reciprocal -> looser tolerance than f32.
    assert jnp.allclose(out, ref, atol=1e-2, rtol=1e-2), (
        float(jnp.max(jnp.abs(out - ref))))

    print("KERNEL_OK")
</pallas_src>

<mosaic_0001>
module attributes {stable_mosaic.version = 11 : i64} {
  func.func @_mha_kernel(%arg0: i32, %arg1: i32, %arg2: memref<16x32xbf16, #tpu.memory_space<vmem>>, %arg3: memref<1x32x8xbf16, #tpu.memory_space<vmem>>, %arg4: memref<1x32x8xbf16, #tpu.memory_space<vmem>>, %arg5: memref<1x32x8xbf16, #tpu.memory_space<vmem>>, %arg6: memref<1x8x32xbf16, #tpu.memory_space<vmem>>, %arg7: memref<1x32xf32, #tpu.memory_space<vmem>>, %arg8: memref<16x32xf32, #tpu.memory_space<vmem>>, %arg9: memref<16x32xf32, #tpu.memory_space<vmem>>) attributes {dimension_semantics = [#tpu.dimension_semantics<parallel>, #tpu.dimension_semantics<arbitrary>], iteration_bounds = array<i64: 2, 4>, scalar_prefetch = 0 : i64, scratch_operands = 1 : i64, tpu.core_type = #tpu.core_type<tc>, window_params = [{transform_indices = @transform_0, window_bounds = array<i64: 16, 32>}, {transform_indices = @transform_1, window_bounds = array<i64: 1, 32, 8>}, {transform_indices = @transform_2, window_bounds = array<i64: 1, 32, 8>}, {transform_indices = @transform_3, window_bounds = array<i64: 1, 32, 8>}, {transform_indices = @transform_4, window_bounds = array<i64: 1, 8, 32>}, {pipeline_mode = #tpu.pipeline_mode<synchronous>, transform_indices = @transform_5, window_bounds = array<i64: 1, 32>}, {transform_indices = @transform_6, window_bounds = array<i64: 16, 32>}]} {
    %c0_i32 = arith.constant 0 : i32
    %0 = arith.cmpi eq, %arg1, %c0_i32 : i32
    %1 = arith.extui %0 : i1 to i32
    %c0_i32_0 = arith.constant 0 : i32
    %2 = arith.cmpi ne, %1, %c0_i32_0 : i32
    scf.if %2 {
      %cst_28 = arith.constant 0.000000e+00 : f32
      %52 = vector.broadcast %cst_28 : f32 to vector<16x32xf32>
      %c0_29 = arith.constant 0 : index
      %c0_30 = arith.constant 0 : index
      %53 = vector.load %arg9[%c0_29, %c0_30] : memref<16x32xf32, #tpu.memory_space<vmem>>, vector<16x32xf32>
      tpu.vector_store %arg9[%c0_29, %c0_30], %52 {strides = array<i32>} : memref<16x32xf32, #tpu.memory_space<vmem>>, vector<16x32xf32>,
    } else {
    }
    %c0 = arith.constant 0 : index
    %c0_1 = arith.constant 0 : index
    %3 = vector.load %arg2[%c0, %c0_1] : memref<16x32xbf16, #tpu.memory_space<vmem>>, vector<16x32xbf16>
    %c0_2 = arith.constant 0 : index
    %c0_3 = arith.constant 0 : index
    %c0_4 = arith.constant 0 : index
    %4 = vector.load %arg3[%c0_2, %c0_3, %c0_4] : memref<1x32x8xbf16, #tpu.memory_space<vmem>>, vector<1x32x8xbf16>
    %5 = vector.shape_cast %4 : vector<1x32x8xbf16> to vector<32x8xbf16>
    %cst = arith.constant dense<0.000000e+00> : vector<16x8xf32>
    %6 = tpu.matmul %3, %5, %cst {dimension_numbers = #tpu.dot_dimension_numbers<[1], [0], [0], [1], [0, 0, 1, 1], [], []>} : vector<16x32xbf16>, vector<32x8xbf16>, vector<16x8xf32> -> vector<16x8xf32>
    %c0_5 = arith.constant 0 : index
    %c0_6 = arith.constant 0 : index
    %c0_7 = arith.constant 0 : index
    %7 = vector.load %arg4[%c0_5, %c0_6, %c0_7] : memref<1x32x8xbf16, #tpu.memory_space<vmem>>, vector<1x32x8xbf16>
    %8 = vector.shape_cast %7 : vector<1x32x8xbf16> to vector<32x8xbf16>
    %cst_8 = arith.constant dense<0.000000e+00> : vector<16x8xf32>
    %9 = tpu.matmul %3, %8, %cst_8 {dimension_numbers = #tpu.dot_dimension_numbers<[1], [0], [0], [1], [0, 0, 1, 1], [], []>} : vector<16x32xbf16>, vector<32x8xbf16>, vector<16x8xf32> -> vector<16x8xf32>
    %c0_9 = arith.constant 0 : index
    %c0_10 = arith.constant 0 : index
    %c0_11 = arith.constant 0 : index
    %10 = vector.load %arg5[%c0_9, %c0_10, %c0_11] : memref<1x32x8xbf16, #tpu.memory_space<vmem>>, vector<1x32x8xbf16>
    %11 = vector.shape_cast %10 : vector<1x32x8xbf16> to vector<32x8xbf16>
    %cst_12 = arith.constant dense<0.000000e+00> : vector<16x8xf32>
    %12 = tpu.matmul %3, %11, %cst_12 {dimension_numbers = #tpu.dot_dimension_numbers<[1], [0], [0], [1], [0, 0, 1, 1], [], []>} : vector<16x32xbf16>, vector<32x8xbf16>, vector<16x8xf32> -> vector<16x8xf32>
    %13 = arith.truncf %6 : vector<16x8xf32> to vector<16x8xbf16>
    %14 = vector.shape_cast %13 : vector<16x8xbf16> to vector<2x8x8xbf16>
    %15 = arith.truncf %9 : vector<16x8xf32> to vector<16x8xbf16>
    %16 = vector.shape_cast %15 : vector<16x8xbf16> to vector<2x8x8xbf16>
    %17 = arith.truncf %12 : vector<16x8xf32> to vector<16x8xbf16>
    %18 = vector.shape_cast %17 : vector<16x8xbf16> to vector<2x8x8xbf16>
    "tpu.trace_start"() <{level = 10 : i32, message = "bqd,bkd->bqk"}> : () -> ()
    %cst_13 = arith.constant dense<0.000000e+00> : vector<2x8x8xf32>
    %19 = tpu.matmul %14, %16, %cst_13 {dimension_numbers = #tpu.dot_dimension_numbers<[2], [2], [1], [1], [0, 0, 0, 1, 1, 1], [0], [0]>} : vector<2x8x8xbf16>, vector<2x8x8xbf16>, vector<2x8x8xf32> -> vector<2x8x8xf32>
    "tpu.trace_stop"() : () -> ()
    %20 = tpu.iota {dimensions = array<i32: 0>} : vector<8x8xi32>
    %21 = tpu.iota {dimensions = array<i32: 1>} : vector<8x8xi32>
    %22 = arith.cmpi sle, %21, %20 : vector<8x8xi32>
    %cst_14 = arith.constant 0.000000e+00 : f32
    %cst_15 = arith.constant -1.000000e+30 : f32
    %23 = vector.broadcast %cst_14 : f32 to vector<8x8xf32>
    %24 = vector.broadcast %cst_15 : f32 to vector<8x8xf32>
    %25 = arith.select %22, %23, %24 : vector<8x8xi1>, vector<8x8xf32>
    %26 = vector.shape_cast %25 : vector<8x8xf32> to vector<1x8x8xf32>
    %27 = vector.broadcast %26 : vector<1x8x8xf32> to vector<2x8x8xf32>
    %28 = arith.addf %19, %27 : vector<2x8x8xf32>
    %cst_16 = arith.constant dense<0xFF800000> : vector<2x8xf32>
    %29 = vector.multi_reduction <maximumf>, %28, %cst_16 [2] : vector<2x8x8xf32> to vector<2x8xf32>
    %30 = vector.shape_cast %29 : vector<2x8xf32> to vector<2x8x1xf32>
    %31 = vector.broadcast %30 : vector<2x8x1xf32> to vector<2x8x8xf32>
    %32 = arith.subf %28, %31 : vector<2x8x8xf32>
    %33 = math.exp %32 : vector<2x8x8xf32>
    %cst_17 = arith.constant dense<0.000000e+00> : vector<2x8xf32>
    %34 = vector.multi_reduction <add>, %33, %cst_17 [2] : vector<2x8x8xf32> to vector<2x8xf32>
    %35 = vector.shape_cast %34 : vector<2x8xf32> to vector<2x8x1xf32>
    %36 = tpu.reciprocal %35 {approx = true} : vector<2x8x1xf32> -> vector<2x8x1xf32>
    %37 = vector.broadcast %36 : vector<2x8x1xf32> to vector<2x8x8xf32>
    %38 = arith.mulf %33, %37 : vector<2x8x8xf32>
    %39 = arith.truncf %38 : vector<2x8x8xf32> to vector<2x8x8xbf16>
    "tpu.trace_start"() <{level = 10 : i32, message = "bqk,bkd->bqd"}> : () -> ()
    %cst_18 = arith.constant dense<0.000000e+00> : vector<2x8x8xf32>
    %40 = tpu.matmul %39, %18, %cst_18 {dimension_numbers = #tpu.dot_dimension_numbers<[2], [1], [1], [2], [0, 0, 0, 1, 1, 2], [0], [0]>} : vector<2x8x8xbf16>, vector<2x8x8xbf16>, vector<2x8x8xf32> -> vector<2x8x8xf32>
    "tpu.trace_stop"() : () -> ()
    %41 = arith.truncf %40 : vector<2x8x8xf32> to vector<2x8x8xbf16>
    %42 = vector.shape_cast %41 : vector<2x8x8xbf16> to vector<16x8xbf16>
    %c0_19 = arith.constant 0 : index
    %c0_20 = arith.constant 0 : index
    %43 = vector.load %arg9[%c0_19, %c0_20] : memref<16x32xf32, #tpu.memory_space<vmem>>, vector<16x32xf32>
    %c0_21 = arith.constant 0 : index
    %c0_22 = arith.constant 0 : index
    %c0_23 = arith.constant 0 : index
    %44 = vector.load %arg6[%c0_21, %c0_22, %c0_23] : memref<1x8x32xbf16, #tpu.memory_space<vmem>>, vector<1x8x32xbf16>
    %45 = vector.shape_cast %44 : vector<1x8x32xbf16> to vector<8x32xbf16>
    %cst_24 = arith.constant dense<0.000000e+00> : vector<16x32xf32>
    %46 = tpu.matmul %42, %45, %cst_24 {dimension_numbers = #tpu.dot_dimension_numbers<[1], [0], [0], [1], [0, 0, 1, 1], [], []>} : vector<16x8xbf16>, vector<8x32xbf16>, vector<16x32xf32> -> vector<16x32xf32>
    %47 = arith.addf %43, %46 : vector<16x32xf32>
    %c0_25 = arith.constant 0 : index
    %c0_26 = arith.constant 0 : index
    %48 = vector.load %arg9[%c0_25, %c0_26] : memref<16x32xf32, #tpu.memory_space<vmem>>, vector<16x32xf32>
    tpu.vector_store %arg9[%c0_25, %c0_26], %47 {strides = array<i32>} : memref<16x32xf32, #tpu.memory_space<vmem>>, vector<16x32xf32>,
    %c3_i32 = arith.constant 3 : i32
    %49 = arith.cmpi eq, %arg1, %c3_i32 : i32
    %50 = arith.extui %49 : i1 to i32
    %c0_i32_27 = arith.constant 0 : i32
    %51 = arith.cmpi ne, %50, %c0_i32_27 : i32
    scf.if %51 {
      %c0_28 = arith.constant 0 : index
      %c0_29 = arith.constant 0 : index
      %52 = vector.load %arg9[%c0_28, %c0_29] : memref<16x32xf32, #tpu.memory_space<vmem>>, vector<16x32xf32>
      %c0_30 = arith.constant 0 : index
      %c0_31 = arith.constant 0 : index
      %53 = vector.load %arg7[%c0_30, %c0_31] : memref<1x32xf32, #tpu.memory_space<vmem>>, vector<1x32xf32>
      %54 = vector.broadcast %53 : vector<1x32xf32> to vector<16x32xf32>
      %55 = arith.addf %52, %54 : vector<16x32xf32>
      %c0_32 = arith.constant 0 : index
      %c0_33 = arith.constant 0 : index
      %56 = vector.load %arg8[%c0_32, %c0_33] : memref<16x32xf32, #tpu.memory_space<vmem>>, vector<16x32xf32>
      tpu.vector_store %arg8[%c0_32, %c0_33], %55 {strides = array<i32>} : memref<16x32xf32, #tpu.memory_space<vmem>>, vector<16x32xf32>,
    } else {
    }
    return
  }
  func.func @transform_0(%arg0: i32, %arg1: i32) -> (i32, i32) {
    %c0_i32 = arith.constant 0 : i32
    %c0_i32_0 = arith.constant 0 : i32
    return %arg0, %c0_i32 : i32, i32
  }
  func.func @transform_1(%arg0: i32, %arg1: i32) -> (i32, i32, i32) {
    %c0_i32 = arith.constant 0 : i32
    %c0_i32_0 = arith.constant 0 : i32
    %c0_i32_1 = arith.constant 0 : i32
    return %arg1, %c0_i32, %c0_i32_0 : i32, i32, i32
  }
  func.func @transform_2(%arg0: i32, %arg1: i32) -> (i32, i32, i32) {
    %c0_i32 = arith.constant 0 : i32
    %c0_i32_0 = arith.constant 0 : i32
    %c0_i32_1 = arith.constant 0 : i32
    return %arg1, %c0_i32, %c0_i32_0 : i32, i32, i32
  }
  func.func @transform_3(%arg0: i32, %arg1: i32) -> (i32, i32, i32) {
    %c0_i32 = arith.constant 0 : i32
    %c0_i32_0 = arith.constant 0 : i32
    %c0_i32_1 = arith.constant 0 : i32
    return %arg1, %c0_i32, %c0_i32_0 : i32, i32, i32
  }
  func.func @transform_4(%arg0: i32, %arg1: i32) -> (i32, i32, i32) {
    %c0_i32 = arith.constant 0 : i32
    %c0_i32_0 = arith.constant 0 : i32
    %c0_i32_1 = arith.constant 0 : i32
    return %arg1, %c0_i32, %c0_i32_0 : i32, i32, i32
  }
  func.func @transform_5(%arg0: i32, %arg1: i32) -> (i32, i32) {
    %c0_i32 = arith.constant 0 : i32
    %c0_i32_0 = arith.constant 0 : i32
    %c0_i32_1 = arith.constant 0 : i32
    return %c0_i32, %c0_i32_0 : i32, i32
  }
  func.func @transform_6(%arg0: i32, %arg1: i32) -> (i32, i32) {
    %c0_i32 = arith.constant 0 : i32
    %c0_i32_0 = arith.constant 0 : i32
    return %arg0, %c0_i32 : i32, i32
  }
}

</mosaic_0001>

<llo_original>
// kernel: tpu_custom_call.1
$region0: #{tpu_custom_call.1}
  #allocation0 [shape = 'u32[]', space=smem, size = 0x4, offset = 0x4, fixed_abs, tag = 'smem constant byte address 0x4 - core index']
  #allocation1 [shape = 'u32[144,128]{1,0:T(1,128)}', space=vmem, size = 0x12000, scoped, tag = 'internal scratch']
  #allocation2 [shape = 'f32[16,32]{1,0:T(8,128)}', space=vmem, size = 0x2000, scoped, tag = 'scratch operand']
  %s0 = inlined_call_operand.vmem [shape: bf16[32,32], index: 0, kind: input, shape index: {}]
  %s1 = inlined_call_operand.vmem [shape: bf16[4,32,8], index: 1, kind: input, shape index: {}]
  %s2 = inlined_call_operand.vmem [shape: bf16[4,32,8], index: 2, kind: input, shape index: {}]
  %s3 = inlined_call_operand.vmem [shape: bf16[4,32,8], index: 3, kind: input, shape index: {}]
  %s4 = inlined_call_operand.vmem [shape: bf16[4,8,32], index: 4, kind: input, shape index: {}]
  %s5 = inlined_call_operand.vmem [shape: f32[1,32], index: 5, kind: input, shape index: {}]
  %s6 = inlined_call_operand.hbm [shape: f32[32,32], index: 6, kind: output, shape index: {}]
  %s7 = sld [smem:[#allocation0]]
  $region65: #{tpu_custom_call.1} parent=0
    _
  %s9 = ssub.s32 1, %s7
  %s10 = scalar_select 0, %s9, %s7
  $region1: #{tpu_custom_call.1} parent=0
    #allocation3 [shape = 'u8[16384]{0}', space=vmem, size = 0x4000, scoped, tag = 'output window, operand 0']
    #allocation4 [shape = 's32[2]{0}', space=sflag, size = 0x8, scoped, tag = 'scoped memory for tpu_custom_call.1']
    %11 = vsyncpa [#allocation4], 0
    %s12 = scalar_lea.sflag [#allocation4], 1
    %13 = vsyncpa %s12, 0
    loop: start=0, step=1, limit=10
    $region2: #{tpu_custom_call.1} parent=1 // loop_pre_header
      _
    $region3: #{tpu_custom_call.1} parent=1 // loop_header
      %s15 = sphi 0, %s19
      %p16 = scmp.ge.s32.totalorder %s15, 10
      %s22 = sphi 0, %s34
      %s23 = sphi 0, %s30
      %s24 = sphi 0, %s22
      %s25 = sphi 0, %s23
      %s26 = sphi 0, %s24
      %s27 = sphi 0, %s25
      %s37 = sphi 0, %s39
      %s40 = sphi 0, %s37
      %s41 = sphi 0, %s40
      %s57 = sphi 0, %s41
      %s63 = sphi 0, %s65
      %s66 = sphi 0, %s63
      %s67 = sphi 0, %s66
      %s83 = sphi 0, %s67
      %s89 = sphi 0, %s91
      %s92 = sphi 0, %s89
      %s93 = sphi 0, %s92
      %s109 = sphi 0, %s93
      %s115 = sphi 0, %s117
      %s118 = sphi 0, %s115
      %s119 = sphi 0, %s118
      %s135 = sphi 0, %s119
      %s141 = sphi 0, %s143
      %s144 = sphi 0, %s141
      %s145 = sphi 0, %s144
      %s161 = sphi 0, %s145
      %s165 = sphi 0, %s165
      %s167 = sphi 0, %s165
      %s168 = sphi 0, %s167
      %s182 = sphi 0, %s168
      %s188 = sphi 0, %s190
      %s191 = sphi 0, %s188
      %s192 = sphi 0, %s191
      %s208 = sphi 0, %s192
    $region4: #{tpu_custom_call.1} parent=1 // loop_header_branch
      %18 = sbr.rel (%p16) target = $region8
    $region5: #{tpu_custom_call.1} parent=1 // loop_body
      %s20 = ssub.s32 %s15, 1
      %s21 = ssub.s32 %s15, 2
      %s28 = sadd.s32 1, %s23
      %p29 = scmp.ge.s32.totalorder %s28, 4
      %s30 = scalar_select %p29, 0, %s28
      %s31 = sadd.s32 1, %s22
      %s32 = scalar_select %p29, %s31, %s22
      %p33 = scmp.ge.s32.totalorder %s32, 2
      %s34 = scalar_select %p33, 0, %s32
      %s35 = ssub.s32 %s22, %s34
      %p36 = scmp.eq.s32.totalorder %s35, 0
      %s38 = sadd.s32 %s37, 1
      %s39 = scalar_select %p36, %s37, %s38
      %p42 = pneg %p36
      %p43 = scmp.eq.s32.totalorder %s15, 7
      %p44 = por %p42, %p43
      %p45 = scmp.ne.s32.totalorder %s37, %s40
      %p46 = scmp.eq.s32.totalorder %s15, 0
      %p47 = por %p45, %p46
      %p48 = scmp.ne.s32.totalorder %s37, %s40
      %p49 = scmp.eq.s32.totalorder %s20, 7
      %p50 = por %p48, %p49
      %p51 = scmp.ne.s32.totalorder %s40, %s41
      %p52 = scmp.eq.s32.totalorder %s20, 0
      %p53 = por %p51, %p52
      %p54 = scmp.ne.s32.totalorder %s40, %s41
      %p55 = scmp.eq.s32.totalorder %s21, 7
      %p56 = por %p54, %p55
      %p58 = scmp.ne.s32.totalorder %s41, %s57
      %p59 = scmp.eq.s32.totalorder %s21, 0
      %p60 = por %p58, %p59
      %s61 = ssub.s32 %s23, %s30
      %p62 = scmp.eq.s32.totalorder %s61, 0
      %s64 = sadd.s32 %s63, 1
      %s65 = scalar_select %p62, %s63, %s64
      %p68 = pneg %p62
      %p69 = scmp.eq.s32.totalorder %s15, 7
      %p70 = por %p68, %p69
      %p71 = scmp.ne.s32.totalorder %s63, %s66
      %p72 = scmp.eq.s32.totalorder %s15, 0
      %p73 = por %p71, %p72
      %p74 = scmp.ne.s32.totalorder %s63, %s66
      %p75 = scmp.eq.s32.totalorder %s20, 7
      %p76 = por %p74, %p75
      %p77 = scmp.ne.s32.totalorder %s66, %s67
      %p78 = scmp.eq.s32.totalorder %s20, 0
      %p79 = por %p77, %p78
      %p80 = scmp.ne.s32.totalorder %s66, %s67
      %p81 = scmp.eq.s32.totalorder %s21, 7
      %p82 = por %p80, %p81
      %p84 = scmp.ne.s32.totalorder %s67, %s83
      %p85 = scmp.eq.s32.totalorder %s21, 0
      %p86 = por %p84, %p85
      %s87 = ssub.s32 %s23, %s30
      %p88 = scmp.eq.s32.totalorder %s87, 0
      %s90 = sadd.s32 %s89, 1
      %s91 = scalar_select %p88, %s89, %s90
      %p94 = pneg %p88
      %p95 = scmp.eq.s32.totalorder %s15, 7
      %p96 = por %p94, %p95
      %p97 = scmp.ne.s32.totalorder %s89, %s92
      %p98 = scmp.eq.s32.totalorder %s15, 0
      %p99 = por %p97, %p98
      %p100 = scmp.ne.s32.totalorder %s89, %s92
      %p101 = scmp.eq.s32.totalorder %s20, 7
      %p102 = por %p100, %p101
      %p103 = scmp.ne.s32.totalorder %s92, %s93
      %p104 = scmp.eq.s32.totalorder %s20, 0
      %p105 = por %p103, %p104
      %p106 = scmp.ne.s32.totalorder %s92, %s93
      %p107 = scmp.eq.s32.totalorder %s21, 7
      %p108 = por %p106, %p107
      %p110 = scmp.ne.s32.totalorder %s93, %s109
      %p111 = scmp.eq.s32.totalorder %s21, 0
      %p112 = por %p110, %p111
      %s113 = ssub.s32 %s23, %s30
      %p114 = scmp.eq.s32.totalorder %s113, 0
      %s116 = sadd.s32 %s115, 1
      %s117 = scalar_select %p114, %s115, %s116
      %p120 = pneg %p114
      %p121 = scmp.eq.s32.totalorder %s15, 7
      %p122 = por %p120, %p121
      %p123 = scmp.ne.s32.totalorder %s115, %s118
      %p124 = scmp.eq.s32.totalorder %s15, 0
      %p125 = por %p123, %p124
      %p126 = scmp.ne.s32.totalorder %s115, %s118
      %p127 = scmp.eq.s32.totalorder %s20, 7
      %p128 = por %p126, %p127
      %p129 = scmp.ne.s32.totalorder %s118, %s119
      %p130 = scmp.eq.s32.totalorder %s20, 0
      %p131 = por %p129, %p130
      %p132 = scmp.ne.s32.totalorder %s118, %s119
      %p133 = scmp.eq.s32.totalorder %s21, 7
      %p134 = por %p132, %p133
      %p136 = scmp.ne.s32.totalorder %s119, %s135
      %p137 = scmp.eq.s32.totalorder %s21, 0
      %p138 = por %p136, %p137
      %s139 = ssub.s32 %s23, %s30
      %p140 = scmp.eq.s32.totalorder %s139, 0
      %s142 = sadd.s32 %s141, 1
      %s143 = scalar_select %p140, %s141, %s142
      %p146 = pneg %p140
      %p147 = scmp.eq.s32.totalorder %s15, 7
      %p148 = por %p146, %p147
      %p149 = scmp.ne.s32.totalorder %s141, %s144
      %p150 = scmp.eq.s32.totalorder %s15, 0
      %p151 = por %p149, %p150
      %p152 = scmp.ne.s32.totalorder %s141, %s144
      %p153 = scmp.eq.s32.totalorder %s20, 7
      %p154 = por %p152, %p153
      %p155 = scmp.ne.s32.totalorder %s144, %s145
      %p156 = scmp.eq.s32.totalorder %s20, 0
      %p157 = por %p155, %p156
      %p158 = scmp.ne.s32.totalorder %s144, %s145
      %p159 = scmp.eq.s32.totalorder %s21, 7
      %p160 = por %p158, %p159
      %p162 = scmp.ne.s32.totalorder %s145, %s161
      %p163 = scmp.eq.s32.totalorder %s21, 0
      %p164 = por %p162, %p163
      %s166 = sadd.s32 %s165, 1
      %p169 = scmp.eq.s32.totalorder %s15, 7
      %p170 = scmp.ne.s32.totalorder %s165, %s167
      %p171 = scmp.eq.s32.totalorder %s15, 0
      %p172 = por %p170, %p171
      %p173 = scmp.ne.s32.totalorder %s165, %s167
      %p174 = scmp.eq.s32.totalorder %s20, 7
      %p175 = por %p173, %p174
      %p176 = scmp.ne.s32.totalorder %s167, %s168
      %p177 = scmp.eq.s32.totalorder %s20, 0
      %p178 = por %p176, %p177
      %p179 = scmp.ne.s32.totalorder %s167, %s168
      %p180 = scmp.eq.s32.totalorder %s21, 7
      %p181 = por %p179, %p180
      %p183 = scmp.ne.s32.totalorder %s168, %s182
      %p184 = scmp.eq.s32.totalorder %s21, 0
      %p185 = por %p183, %p184
      %s186 = ssub.s32 %s22, %s34
      %p187 = scmp.eq.s32.totalorder %s186, 0
      %s189 = sadd.s32 %s188, 1
      %s190 = scalar_select %p187, %s188, %s189
      %p193 = pneg %p187
      %p194 = scmp.eq.s32.totalorder %s15, 7
      %p195 = por %p193, %p194
      %p196 = scmp.ne.s32.totalorder %s188, %s191
      %p197 = scmp.eq.s32.totalorder %s15, 0
      %p198 = por %p196, %p197
      %p199 = scmp.ne.s32.totalorder %s188, %s191
      %p200 = scmp.eq.s32.totalorder %s20, 7
      %p201 = por %p199, %p200
      %p202 = scmp.ne.s32.totalorder %s191, %s192
      %p203 = scmp.eq.s32.totalorder %s20, 0
      %p204 = por %p202, %p203
      %p205 = scmp.ne.s32.totalorder %s191, %s192
      %p206 = scmp.eq.s32.totalorder %s21, 7
      %p207 = por %p205, %p206
      %p209 = scmp.ne.s32.totalorder %s192, %s208
      %p210 = scmp.eq.s32.totalorder %s21, 0
      %p211 = por %p209, %p210
      %p212 = scmp.le.s32.totalorder 1, %s15
      %p213 = scmp.lt.s32.totalorder %s15, 9
      %p214 = pnand %p212, %p213
      %p215 = pneg %p214
      // Predicated region
      $region9: #{tpu_custom_call.1} parent=5 // pred_check
        _
      $region10: #{tpu_custom_call.1} parent=5 // pred_check_branch
        %217 = sbr.rel (%p214) target = $region12
      $region11: #{tpu_custom_call.1} parent=5 // pred_region
        %s218 = ssub.s32 %s15, 1
        // Predicated region
        $region13: #{tpu_custom_call.1} parent=11 // pred_check
          %p219 = pneg %p178
        $region14: #{tpu_custom_call.1} parent=11 // pred_check_branch
          %221 = sbr.rel (%p219) target = $region16
        $region15: #{tpu_custom_call.1} parent=11 // pred_region
          _
        $region16: #{tpu_custom_call.1} parent=11 // pred_fallthru
          _
      $region12: #{tpu_custom_call.1} parent=5 // pred_fallthru
        _
      %p222 = scmp.lt.s32.totalorder %s15, 8
      // Predicated region
      $region17: #{tpu_custom_call.1} parent=5 // pred_check
        %p223 = pneg %p222
      $region18: #{tpu_custom_call.1} parent=5 // pred_check_branch
        %225 = sbr.rel (%p223) target = $region20
      $region19: #{tpu_custom_call.1} parent=5 // pred_region
        // Predicated region
        $region21: #{tpu_custom_call.1} parent=19 // pred_check
          %p226 = pneg %p47
        $region22: #{tpu_custom_call.1} parent=19 // pred_check_branch
          %228 = sbr.rel (%p226) target = $region24
        $region23: #{tpu_custom_call.1} parent=19 // pred_region
          %s229 = smul.u32 2, %s22
          %p230 = scmp.lt.s32.totalorder %s229, 3
          %s231 = scalar_select %p230, %s229, 3
          %s232 = smul.addr %s231, 4
          %s233 = scalar_lea.vmem %s0, %s232
          %s234 = smul.u32 2, %s22
        $region24: #{tpu_custom_call.1} parent=19 // pred_fallthru
          _
        // Predicated region
        $region25: #{tpu_custom_call.1} parent=19 // pred_check
          %p235 = pneg %p73
        $region26: #{tpu_custom_call.1} parent=19 // pred_check_branch
          %237 = sbr.rel (%p235) target = $region28
        $region27: #{tpu_custom_call.1} parent=19 // pred_region
          %p238 = scmp.lt.s32.totalorder %s23, 3
          %s239 = scalar_select %p238, %s23, 3
          %s240 = smul.addr %s239, 4
          %s241 = smul.addr %s240, 4
          %s242 = scalar_lea.vmem %s1, %s241
        $region28: #{tpu_custom_call.1} parent=19 // pred_fallthru
          _
        // Predicated region
        $region29: #{tpu_custom_call.1} parent=19 // pred_check
          %p243 = pneg %p99
        $region30: #{tpu_custom_call.1} parent=19 // pred_check_branch
          %245 = sbr.rel (%p243) target = $region32
        $region31: #{tpu_custom_call.1} parent=19 // pred_region
          %p246 = scmp.lt.s32.totalorder %s23, 3
          %s247 = scalar_select %p246, %s23, 3
          %s248 = smul.addr %s247, 4
          %s249 = smul.addr %s248, 4
          %s250 = scalar_lea.vmem %s2, %s249
        $region32: #{tpu_custom_call.1} parent=19 // pred_fallthru
          _
        // Predicated region
        $region33: #{tpu_custom_call.1} parent=19 // pred_check
          %p251 = pneg %p125
        $region34: #{tpu_custom_call.1} parent=19 // pred_check_branch
          %253 = sbr.rel (%p251) target = $region36
        $region35: #{tpu_custom_call.1} parent=19 // pred_region
          %p254 = scmp.lt.s32.totalorder %s23, 3
          %s255 = scalar_select %p254, %s23, 3
          %s256 = smul.addr %s255, 4
          %s257 = smul.addr %s256, 4
          %s258 = scalar_lea.vmem %s3, %s257
        $region36: #{tpu_custom_call.1} parent=19 // pred_fallthru
          _
        // Predicated region
        $region37: #{tpu_custom_call.1} parent=19 // pred_check
          %p259 = pneg %p151
        $region38: #{tpu_custom_call.1} parent=19 // pred_check_branch
          %261 = sbr.rel (%p259) target = $region40
        $region39: #{tpu_custom_call.1} parent=19 // pred_region
          %p262 = scmp.lt.s32.totalorder %s23, 3
          %s263 = scalar_select %p262, %s23, 3
          %s264 = smul.addr %s263, 4
          %s265 = scalar_lea.vmem %s4, %s264
        $region40: #{tpu_custom_call.1} parent=19 // pred_fallthru
          _
      $region20: #{tpu_custom_call.1} parent=5 // pred_fallthru
        _
      %p266 = scmp.le.s32.totalorder 1, %s15
      %p267 = scmp.lt.s32.totalorder %s15, 9
      %p268 = pnand %p266, %p267
      %p269 = pneg %p268
      // Predicated region
      $region41: #{tpu_custom_call.1} parent=5 // pred_check
        _
      $region42: #{tpu_custom_call.1} parent=5 // pred_check_branch
        %271 = sbr.rel (%p268) target = $region44
      $region43: #{tpu_custom_call.1} parent=5 // pred_region
        %s272 = ssub.s32 %s15, 1
        %s273 = smul.u32 2, %s24
        %p274 = scmp.lt.s32.totalorder %s273, 3
        %s275 = scalar_select %p274, %s273, 3
        %s276 = smul.addr %s275, 4
        %s277 = scalar_lea.vmem %s0, %s276
        %p278 = pneg %p53
        %p279 = pneg %p50
        %p280 = scmp.lt.s32.totalorder %s25, 3
        %s281 = scalar_select %p280, %s25, 3
        %s282 = smul.addr %s281, 4
        %s283 = smul.addr %s282, 4
        %s284 = scalar_lea.vmem %s1, %s283
        %p285 = pneg %p79
        %p286 = pneg %p76
        %p287 = scmp.lt.s32.totalorder %s25, 3
        %s288 = scalar_select %p287, %s25, 3
        %s289 = smul.addr %s288, 4
        %s290 = smul.addr %s289, 4
        %s291 = scalar_lea.vmem %s2, %s290
        %p292 = pneg %p105
        %p293 = pneg %p102
        %p294 = scmp.lt.s32.totalorder %s25, 3
        %s295 = scalar_select %p294, %s25, 3
        %s296 = smul.addr %s295, 4
        %s297 = smul.addr %s296, 4
        %s298 = scalar_lea.vmem %s3, %s297
        %p299 = pneg %p131
        %p300 = pneg %p128
        %p301 = scmp.lt.s32.totalorder %s25, 3
        %s302 = scalar_select %p301, %s25, 3
        %s303 = smul.addr %s302, 4
        %s304 = scalar_lea.vmem %s4, %s303
        %p305 = pneg %p157
        %p306 = pneg %p154
        %p307 = pneg %p178
        %p308 = pneg %p175
        %p309 = pneg %p204
        %p310 = pneg %p201
        %s311 = sand.u32 %s191, 1
        %s312 = scalar_lea.sflag [#allocation4], %s311
        %s313 = sand.u32 %s191, 1
        %s314 = smul.addr %s313, 16
        %s315 = scalar_lea.vmem [#allocation3], %s314
        %s316 = smul.u32 2, %s24
        %p317 = scmp.lt.s32.totalorder %s316, 3
        %s318 = scalar_select %p317, %s316, 3
        %s319 = smul.addr %s318, 4
        %s320 = scalar_lea.vmem %s0, %s319
        %s321 = smul.u32 2, %s24
        %p322 = scmp.lt.s32.totalorder %s25, 3
        %s323 = scalar_select %p322, %s25, 3
        %s324 = smul.addr %s323, 4
        %s325 = smul.addr %s324, 4
        %s326 = scalar_lea.vmem %s1, %s325
        %p327 = scmp.lt.s32.totalorder %s25, 3
        %s328 = scalar_select %p327, %s25, 3
        %s329 = smul.addr %s328, 4
        %s330 = smul.addr %s329, 4
        %s331 = scalar_lea.vmem %s2, %s330
        %p332 = scmp.lt.s32.totalorder %s25, 3
        %s333 = scalar_select %p332, %s25, 3
        %s334 = smul.addr %s333, 4
        %s335 = smul.addr %s334, 4
        %s336 = scalar_lea.vmem %s3, %s335
        %p337 = scmp.lt.s32.totalorder %s25, 3
        %s338 = scalar_select %p337, %s25, 3
        %s339 = smul.addr %s338, 4
        %s340 = scalar_lea.vmem %s4, %s339
        %s341 = smul.u32 2, %s24
        %p343 = scmp.eq.s32.totalorder %s25, 0
        // Predicated region
        $region45: #{tpu_custom_call.1} parent=43 // pred_check
          %p344 = pneg %p343
        $region46: #{tpu_custom_call.1} parent=43 // pred_check_branch
          %346 = sbr.rel (%p344) target = $region48
        $region47: #{tpu_custom_call.1} parent=43 // pred_region
          %vm347 = vcmask 261120
          %348 = vst.msk [vmem:[#allocation2] sm:$0xff] %vm347, 0.0
          %349 = vst.msk [vmem:[#allocation2 + $0x8] sm:$0xff] %vm347, 0.0
        $region48: #{tpu_custom_call.1} parent=43 // pred_fallthru
          _
        %v350 = vld [vmem:[%s320] sm:$0xf]
        %v351 = vld [vmem:[%s320 + $0x4] sm:$0xf]
        %v352 = vld [vmem:[%s326] sm:$0xf]
        %v353 = vld [vmem:[%s326 + $0x4] sm:$0xf]
        %v354 = vld [vmem:[%s326 + $0x8] sm:$0xf]
        %v355 = vld [vmem:[%s326 + $0xc] sm:$0xf]
        %v358 = vunpack.c.l.b16 %v350
        %v359 = vunpack.c.l.b16 %v351
        %v360 = vpack.c.b16 %v359, %v358
        %v365 = vunpack.c.l.b16 %v352
        %v366 = vunpack.c.l.b16 %v353
        %v367 = vunpack.c.l.b16 %v354
        %v368 = vunpack.c.l.b16 %v355
        %v369 = vpack.c.b16 %v366, %v365
        %v370 = vpack.c.b16 %v368, %v367
        %vm373 = vcmask 261120
        %v375 = vsel %vm373, %v360, 0
        %377 = vmatprep.subr.bf16.mxu0 0
        %378 = vmatpush1.bf16.msra.mxu0 %v369
        %379 = vmatprep.subr.bf16.mxu0 0
        %380 = vmatpush1.bf16.msra.mxu0 %v370
        %381 = vmatprep.subr.bf16.mxu0 0
        %382 = vmatpush1.bf16.msra.mxu0 0
        %383 = vmatprep.subr.bf16.mxu0 0
        %384 = vmatpush1.bf16.msra.mxu0 0
        %385 = vmatprep.subr.bf16.mxu0 0
        %386 = vmatpush1.bf16.msra.mxu0 0
        %387 = vmatprep.subr.bf16.mxu0 0
        %388 = vmatpush1.bf16.msra.mxu0 0
        %389 = vmatprep.subr.bf16.mxu0 0
        %390 = vmatpush1.bf16.msra.mxu0 0
        %391 = vmatprep.subr.bf16.mxu0 0
        %392 = vmatpush1.bf16.msra.mxu0 0
        %393 = vmatprep.subr.bf16.mxu0 0
        %394 = vmatpush1.bf16.msra.mxu0 0
        %395 = vmatprep.subr.bf16.mxu0 0
        %396 = vmatpush1.bf16.msra.mxu0 0
        %397 = vmatprep.subr.bf16.mxu0 0
        %398 = vmatpush1.bf16.msra.mxu0 0
        %399 = vmatprep.subr.bf16.mxu0 0
        %400 = vmatpush1.bf16.msra.mxu0 0
        %401 = vmatprep.subr.bf16.mxu0 0
        %402 = vmatpush1.bf16.msra.mxu0 0
        %403 = vmatprep.subr.bf16.mxu0 0
        %404 = vmatpush1.bf16.msra.mxu0 0
        %405 = vmatprep.subr.bf16.mxu0 0
        %406 = vmatpush1.bf16.msra.mxu0 0
        %407 = vmatprep.subr.bf16.mxu0 0
        %408 = vmatpush1.bf16.msra.mxu0 0
        %409 = vmatprep.mubr.bf16.mxu0 0
        %410 = vmatmul.mubr.bf16.gmra.mrb[0].mxu0 %v375
        %v411 = vpop.f32.mrb[0].mxu0
        %v412 = vadd.f32 0.0, %v411
        %v413 = vpop.f32.mrb[0].mxu0
        %v414 = vpop.f32.mrb[0].mxu0
        %v415 = vadd.f32 0.0, %v414
        %v416 = vpop.f32.mrb[0].mxu0
        %417 = vdwg.mxu0
        %v418 = vld [vmem:[%s331] sm:$0xf]
        %v419 = vld [vmem:[%s331 + $0x4] sm:$0xf]
        %v420 = vld [vmem:[%s331 + $0x8] sm:$0xf]
        %v421 = vld [vmem:[%s331 + $0xc] sm:$0xf]
        %v426 = vunpack.c.l.b16 %v418
        %v427 = vunpack.c.l.b16 %v419
        %v428 = vunpack.c.l.b16 %v420
        %v429 = vunpack.c.l.b16 %v421
        %v430 = vpack.c.b16 %v427, %v426
        %v431 = vpack.c.b16 %v429, %v428
        %434 = vmatprep.subr.bf16.mxu0 0
        %435 = vmatpush1.bf16.msra.mxu0 %v430
        %436 = vmatprep.subr.bf16.mxu0 0
        %437 = vmatpush1.bf16.msra.mxu0 %v431
        %438 = vmatprep.subr.bf16.mxu0 0
        %439 = vmatpush1.bf16.msra.mxu0 0
        %440 = vmatprep.subr.bf16.mxu0 0
        %441 = vmatpush1.bf16.msra.mxu0 0
        %442 = vmatprep.subr.bf16.mxu0 0
        %443 = vmatpush1.bf16.msra.mxu0 0
        %444 = vmatprep.subr.bf16.mxu0 0
        %445 = vmatpush1.bf16.msra.mxu0 0
        %446 = vmatprep.subr.bf16.mxu0 0
        %447 = vmatpush1.bf16.msra.mxu0 0
        %448 = vmatprep.subr.bf16.mxu0 0
        %449 = vmatpush1.bf16.msra.mxu0 0
        %450 = vmatprep.subr.bf16.mxu0 0
        %451 = vmatpush1.bf16.msra.mxu0 0
        %452 = vmatprep.subr.bf16.mxu0 0
        %453 = vmatpush1.bf16.msra.mxu0 0
        %454 = vmatprep.subr.bf16.mxu0 0
        %455 = vmatpush1.bf16.msra.mxu0 0
        %456 = vmatprep.subr.bf16.mxu0 0
        %457 = vmatpush1.bf16.msra.mxu0 0
        %458 = vmatprep.subr.bf16.mxu0 0
        %459 = vmatpush1.bf16.msra.mxu0 0
        %460 = vmatprep.subr.bf16.mxu0 0
        %461 = vmatpush1.bf16.msra.mxu0 0
        %462 = vmatprep.subr.bf16.mxu0 0
        %463 = vmatpush1.bf16.msra.mxu0 0
        %464 = vmatprep.subr.bf16.mxu0 0
        %465 = vmatpush1.bf16.msra.mxu0 0
        %466 = vmatprep.mubr.bf16.mxu0 0
        %467 = vmatmul.mubr.bf16.gmra.mrb[0].mxu0 %v375
        %v468 = vpop.f32.mrb[0].mxu0
        %v469 = vadd.f32 0.0, %v468
        %v470 = vpop.f32.mrb[0].mxu0
        %v471 = vpop.f32.mrb[0].mxu0
        %v472 = vadd.f32 0.0, %v471
        %v473 = vpop.f32.mrb[0].mxu0
        %474 = vdwg.mxu0
        %v475 = vld [vmem:[%s336] sm:$0xf]
        %v476 = vld [vmem:[%s336 + $0x4] sm:$0xf]
        %v477 = vld [vmem:[%s336 + $0x8] sm:$0xf]
        %v478 = vld [vmem:[%s336 + $0xc] sm:$0xf]
        %v483 = vunpack.c.l.b16 %v475
        %v484 = vunpack.c.l.b16 %v476
        %v485 = vunpack.c.l.b16 %v477
        %v486 = vunpack.c.l.b16 %v478
        %v487 = vpack.c.b16 %v484, %v483
        %v488 = vpack.c.b16 %v486, %v485
        %491 = vmatprep.subr.bf16.mxu0 0
        %492 = vmatpush1.bf16.msra.mxu0 %v487
        %493 = vmatprep.subr.bf16.mxu0 0
        %494 = vmatpush1.bf16.msra.mxu0 %v488
        %495 = vmatprep.subr.bf16.mxu0 0
        %496 = vmatpush1.bf16.msra.mxu0 0
        %497 = vmatprep.subr.bf16.mxu0 0
        %498 = vmatpush1.bf16.msra.mxu0 0
        %499 = vmatprep.subr.bf16.mxu0 0
        %500 = vmatpush1.bf16.msra.mxu0 0
        %501 = vmatprep.subr.bf16.mxu0 0
        %502 = vmatpush1.bf16.msra.mxu0 0
        %503 = vmatprep.subr.bf16.mxu0 0
        %504 = vmatpush1.bf16.msra.mxu0 0
        %505 = vmatprep.subr.bf16.mxu0 0
        %506 = vmatpush1.bf16.msra.mxu0 0
        %507 = vmatprep.subr.bf16.mxu0 0
        %508 = vmatpush1.bf16.msra.mxu0 0
        %509 = vmatprep.subr.bf16.mxu0 0
        %510 = vmatpush1.bf16.msra.mxu0 0
        %511 = vmatprep.subr.bf16.mxu0 0
        %512 = vmatpush1.bf16.msra.mxu0 0
        %513 = vmatprep.subr.bf16.mxu0 0
        %514 = vmatpush1.bf16.msra.mxu0 0
        %515 = vmatprep.subr.bf16.mxu0 0
        %516 = vmatpush1.bf16.msra.mxu0 0
        %517 = vmatprep.subr.bf16.mxu0 0
        %518 = vmatpush1.bf16.msra.mxu0 0
        %519 = vmatprep.subr.bf16.mxu0 0
        %520 = vmatpush1.bf16.msra.mxu0 0
        %521 = vmatprep.subr.bf16.mxu0 0
        %522 = vmatpush1.bf16.msra.mxu0 0
        %523 = vmatprep.mubr.bf16.mxu0 0
        %524 = vmatmul.mubr.bf16.gmra.mrb[0].mxu0 %v375
        %v525 = vpop.f32.mrb[0].mxu0
        %v526 = vadd.f32 0.0, %v525
        %v527 = vpop.f32.mrb[0].mxu0
        %v528 = vpop.f32.mrb[0].mxu0
        %v529 = vadd.f32 0.0, %v528
        %v530 = vpop.f32.mrb[0].mxu0
        %531 = vdwg.mxu0
        %v532 = vpack.c.bf16 %v415, %v412
        %v534 = vunpack.c.l.b16 %v532
        %v535 = vunpack.c.h.b16 %v532
        %v536 = vpack.c.b16 %v534, %v534
        %v537 = vpack.c.b16 %v535, %v535
        %v538 = vpack.c.bf16 %v472, %v469
        %v540 = vunpack.c.l.b16 %v538
        %v541 = vunpack.c.h.b16 %v538
        %v542 = vpack.c.b16 %v540, %v540
        %v543 = vpack.c.b16 %v541, %v541
        %v544 = vpack.c.bf16 %v529, %v526
        %v546 = vunpack.c.l.b16 %v544
        %v547 = vunpack.c.h.b16 %v544
        %v548 = vpack.c.b16 %v546, %v546
        %v549 = vpack.c.b16 %v547, %v547
        %v550 = vlaneseq
        %v551 = vshrl.u32 %v550, 7
        %v552 = vlaneseq
        %v553 = vand.u32 %v552, 127
        %vm554 = vcmp.le.s32.totalorder %v553, %v551
        %v555 = vsel %vm554, 0.0, -1e+30
        %vm556 = vcmask 64512
        %v558 = vsel %vm556, %v536, 0
        %v561 = vsel %vm556, %v542, 0
        %563 = vmatprep.subr.bf16.mxu0 0
        %564 = vmatpush1.bf16.xpose.msra.mxu0 %v561
        %565 = vmatprep.subr.bf16.mxu0 0
        %566 = vmatpush1.bf16.xpose.msra.mxu0 0
        %567 = vmatprep.subr.bf16.mxu0 0
        %568 = vmatpush1.bf16.xpose.msra.mxu0 0
        %569 = vmatprep.subr.bf16.mxu0 0
        %570 = vmatpush1.bf16.xpose.msra.mxu0 0
        %571 = vmatprep.subr.bf16.mxu0 0
        %572 = vmatpush1.bf16.xpose.msra.mxu0 0
        %573 = vmatprep.subr.bf16.mxu0 0
        %574 = vmatpush1.bf16.xpose.msra.mxu0 0
        %575 = vmatprep.subr.bf16.mxu0 0
        %576 = vmatpush1.bf16.xpose.msra.mxu0 0
        %577 = vmatprep.subr.bf16.mxu0 0
        %578 = vmatpush1.bf16.xpose.msra.mxu0 0
        %579 = vmatprep.subr.bf16.mxu0 0
        %580 = vmatpush1.bf16.xpose.msra.mxu0 0
        %581 = vmatprep.subr.bf16.mxu0 0
        %582 = vmatpush1.bf16.xpose.msra.mxu0 0
        %583 = vmatprep.subr.bf16.mxu0 0
        %584 = vmatpush1.bf16.xpose.msra.mxu0 0
        %585 = vmatprep.subr.bf16.mxu0 0
        %586 = vmatpush1.bf16.xpose.msra.mxu0 0
        %587 = vmatprep.subr.bf16.mxu0 0
        %588 = vmatpush1.bf16.xpose.msra.mxu0 0
        %589 = vmatprep.subr.bf16.mxu0 0
        %590 = vmatpush1.bf16.xpose.msra.mxu0 0
        %591 = vmatprep.subr.bf16.mxu0 0
        %592 = vmatpush1.bf16.xpose.msra.mxu0 0
        %593 = vmatprep.subr.bf16.mxu0 0
        %594 = vmatpush1.bf16.xpose.msra.mxu0 0
        %595 = vmatprep.mubr.bf16.mxu0 0
        %596 = vmatmul.mubr.bf16.gmra.mrb[0].mxu0 %v558
        %v597 = vpop.f32.mrb[0].mxu0
        %v598 = vadd.f32 %v555, %v597
        %v599 = vpop.f32.mrb[0].mxu0
        %v600 = vpop.f32.mrb[0].mxu0
        %v601 = vpop.f32.mrb[0].mxu0
        %602 = vdwg.mxu0
        %v604 = vsel %vm556, %v537, 0
        %v607 = vsel %vm556, %v543, 0
        %609 = vmatprep.subr.bf16.mxu0 0
        %610 = vmatpush1.bf16.xpose.msra.mxu0 %v607
        %611 = vmatprep.subr.bf16.mxu0 0
        %612 = vmatpush1.bf16.xpose.msra.mxu0 0
        %613 = vmatprep.subr.bf16.mxu0 0
        %614 = vmatpush1.bf16.xpose.msra.mxu0 0
        %615 = vmatprep.subr.bf16.mxu0 0
        %616 = vmatpush1.bf16.xpose.msra.mxu0 0
        %617 = vmatprep.subr.bf16.mxu0 0
        %618 = vmatpush1.bf16.xpose.msra.mxu0 0
        %619 = vmatprep.subr.bf16.mxu0 0
        %620 = vmatpush1.bf16.xpose.msra.mxu0 0
        %621 = vmatprep.subr.bf16.mxu0 0
        %622 = vmatpush1.bf16.xpose.msra.mxu0 0
        %623 = vmatprep.subr.bf16.mxu0 0
        %624 = vmatpush1.bf16.xpose.msra.mxu0 0
        %625 = vmatprep.subr.bf16.mxu0 0
        %626 = vmatpush1.bf16.xpose.msra.mxu0 0
        %627 = vmatprep.subr.bf16.mxu0 0
        %628 = vmatpush1.bf16.xpose.msra.mxu0 0
        %629 = vmatprep.subr.bf16.mxu0 0
        %630 = vmatpush1.bf16.xpose.msra.mxu0 0
        %631 = vmatprep.subr.bf16.mxu0 0
        %632 = vmatpush1.bf16.xpose.msra.mxu0 0
        %633 = vmatprep.subr.bf16.mxu0 0
        %634 = vmatpush1.bf16.xpose.msra.mxu0 0
        %635 = vmatprep.subr.bf16.mxu0 0
        %636 = vmatpush1.bf16.xpose.msra.mxu0 0
        %637 = vmatprep.subr.bf16.mxu0 0
        %638 = vmatpush1.bf16.xpose.msra.mxu0 0
        %639 = vmatprep.subr.bf16.mxu0 0
        %640 = vmatpush1.bf16.xpose.msra.mxu0 0
        %641 = vmatprep.mubr.bf16.mxu0 0
        %642 = vmatmul.mubr.bf16.gmra.mrb[0].mxu0 %v604
        %v643 = vpop.f32.mrb[0].mxu0
        %v644 = vadd.f32 %v555, %v643
        %v645 = vpop.f32.mrb[0].mxu0
        %v646 = vpop.f32.mrb[0].mxu0
        %v647 = vpop.f32.mrb[0].mxu0
        %648 = vdwg.mxu0
        %v649 = vsel %vm556, %v598, -inf
        %650 = vmax.xlane.f32.xlu0 %v649
        %v651 = vpop.xlane.xlu0 %650
        %v652 = vsel %vm556, %v644, -inf
        %653 = vmax.xlane.f32.xlu0 %v652
        %v654 = vpop.xlane.xlu0 %653
        %v655 = vsub.f32 %v598, %v651
        %v656 = vsub.f32 %v644, %v654
        %v657 = vmul.f32 %v655, 1.442695
        %v658 = vpow.pop %v657
        %v659 = vmul.f32 %v656, 1.442695
        %v660 = vpow.pop %v659
        %v661 = vsel %vm556, %v658, 0.0
        %662 = vadd.xlane.f32.xlu0 %v661
        %v663 = vpop.xlane.xlu0 %662
        %v664 = vsel %vm556, %v660, 0.0
        %665 = vadd.xlane.f32.xlu0 %v664
        %v666 = vpop.xlane.xlu0 %665
        %v667 = vrcp.pop %v663
        %v668 = vrcp.pop %v666
        %v669 = vmul.f32 %v658, %v667
        %v670 = vmul.f32 %v660, %v668
        %v671 = vpack.c.bf16 %v669, %v669
        %v672 = vpack.c.bf16 %v670, %v670
        %v674 = vsel %vm556, %v671, 0
        %vm676 = vcmask 1043456
        %v678 = vsel %vm676, %v548, 0
        %680 = vmatprep.subr.bf16.mxu0 0
        %681 = vmatpush1.bf16.msra.mxu0 %v678
        %682 = vmatprep.subr.bf16.mxu0 0
        %683 = vmatpush1.bf16.msra.mxu0 0
        %684 = vmatprep.subr.bf16.mxu0 0
        %685 = vmatpush1.bf16.msra.mxu0 0
        %686 = vmatprep.subr.bf16.mxu0 0
        %687 = vmatpush1.bf16.msra.mxu0 0
        %688 = vmatprep.subr.bf16.mxu0 0
        %689 = vmatpush1.bf16.msra.mxu0 0
        %690 = vmatprep.subr.bf16.mxu0 0
        %691 = vmatpush1.bf16.msra.mxu0 0
        %692 = vmatprep.subr.bf16.mxu0 0
        %693 = vmatpush1.bf16.msra.mxu0 0
        %694 = vmatprep.subr.bf16.mxu0 0
        %695 = vmatpush1.bf16.msra.mxu0 0
        %696 = vmatprep.subr.bf16.mxu0 0
        %697 = vmatpush1.bf16.msra.mxu0 0
        %698 = vmatprep.subr.bf16.mxu0 0
        %699 = vmatpush1.bf16.msra.mxu0 0
        %700 = vmatprep.subr.bf16.mxu0 0
        %701 = vmatpush1.bf16.msra.mxu0 0
        %702 = vmatprep.subr.bf16.mxu0 0
        %703 = vmatpush1.bf16.msra.mxu0 0
        %704 = vmatprep.subr.bf16.mxu0 0
        %705 = vmatpush1.bf16.msra.mxu0 0
        %706 = vmatprep.subr.bf16.mxu0 0
        %707 = vmatpush1.bf16.msra.mxu0 0
        %708 = vmatprep.subr.bf16.mxu0 0
        %709 = vmatpush1.bf16.msra.mxu0 0
        %710 = vmatprep.subr.bf16.mxu0 0
        %711 = vmatpush1.bf16.msra.mxu0 0
        %712 = vmatprep.mubr.bf16.mxu0 0
        %713 = vmatmul.mubr.bf16.gmra.mrb[0].mxu0 %v674
        %v714 = vpop.f32.mrb[0].mxu0
        %v715 = vadd.f32 0.0, %v714
        %v716 = vpop.f32.mrb[0].mxu0
        %v717 = vpop.f32.mrb[0].mxu0
        %v718 = vpop.f32.mrb[0].mxu0
        %719 = vdwg.mxu0
        %v721 = vsel %vm556, %v672, 0
        %v724 = vsel %vm676, %v549, 0
        %726 = vmatprep.subr.bf16.mxu0 0
        %727 = vmatpush1.bf16.msra.mxu0 %v724
        %728 = vmatprep.subr.bf16.mxu0 0
        %729 = vmatpush1.bf16.msra.mxu0 0
        %730 = vmatprep.subr.bf16.mxu0 0
        %731 = vmatpush1.bf16.msra.mxu0 0
        %732 = vmatprep.subr.bf16.mxu0 0
        %733 = vmatpush1.bf16.msra.mxu0 0
        %734 = vmatprep.subr.bf16.mxu0 0
        %735 = vmatpush1.bf16.msra.mxu0 0
        %736 = vmatprep.subr.bf16.mxu0 0
        %737 = vmatpush1.bf16.msra.mxu0 0
        %738 = vmatprep.subr.bf16.mxu0 0
        %739 = vmatpush1.bf16.msra.mxu0 0
        %740 = vmatprep.subr.bf16.mxu0 0
        %741 = vmatpush1.bf16.msra.mxu0 0
        %742 = vmatprep.subr.bf16.mxu0 0
        %743 = vmatpush1.bf16.msra.mxu0 0
        %744 = vmatprep.subr.bf16.mxu0 0
        %745 = vmatpush1.bf16.msra.mxu0 0
        %746 = vmatprep.subr.bf16.mxu0 0
        %747 = vmatpush1.bf16.msra.mxu0 0
        %748 = vmatprep.subr.bf16.mxu0 0
        %749 = vmatpush1.bf16.msra.mxu0 0
        %750 = vmatprep.subr.bf16.mxu0 0
        %751 = vmatpush1.bf16.msra.mxu0 0
        %752 = vmatprep.subr.bf16.mxu0 0
        %753 = vmatpush1.bf16.msra.mxu0 0
        %754 = vmatprep.subr.bf16.mxu0 0
        %755 = vmatpush1.bf16.msra.mxu0 0
        %756 = vmatprep.subr.bf16.mxu0 0
        %757 = vmatpush1.bf16.msra.mxu0 0
        %758 = vmatprep.mubr.bf16.mxu0 0
        %759 = vmatmul.mubr.bf16.gmra.mrb[0].mxu0 %v721
        %v760 = vpop.f32.mrb[0].mxu0
        %v761 = vadd.f32 0.0, %v760
        %v762 = vpop.f32.mrb[0].mxu0
        %v763 = vpop.f32.mrb[0].mxu0
        %v764 = vpop.f32.mrb[0].mxu0
        %765 = vdwg.mxu0
        %v766 = vpack.c.bf16 %v715, %v715
        %v767 = vpack.c.bf16 %v761, %v761
        %v768 = vld [vmem:[#allocation2] sm:$0xff]
        %v769 = vld [vmem:[#allocation2 + $0x8] sm:$0xff]
        %v770 = vld [vmem:[%s340] sm:$0xf]
        %v773 = vunpack.c.l.b16 %v766
        %v774 = vunpack.c.l.b16 %v767
        %v775 = vpack.c.b16 %v774, %v773
        %v777 = vsel %vm556, %v775, 0
        %v780 = vsel %vm676, %v770, 0
        %782 = vmatprep.subr.bf16.mxu0 0
        %783 = vmatpush1.bf16.msra.mxu0 %v780
        %784 = vmatprep.subr.bf16.mxu0 0
        %785 = vmatpush1.bf16.msra.mxu0 0
        %786 = vmatprep.subr.bf16.mxu0 0
        %787 = vmatpush1.bf16.msra.mxu0 0
        %788 = vmatprep.subr.bf16.mxu0 0
        %789 = vmatpush1.bf16.msra.mxu0 0
        %790 = vmatprep.subr.bf16.mxu0 0
        %791 = vmatpush1.bf16.msra.mxu0 0
        %792 = vmatprep.subr.bf16.mxu0 0
        %793 = vmatpush1.bf16.msra.mxu0 0
        %794 = vmatprep.subr.bf16.mxu0 0
        %795 = vmatpush1.bf16.msra.mxu0 0
        %796 = vmatprep.subr.bf16.mxu0 0
        %797 = vmatpush1.bf16.msra.mxu0 0
        %798 = vmatprep.subr.bf16.mxu0 0
        %799 = vmatpush1.bf16.msra.mxu0 0
        %800 = vmatprep.subr.bf16.mxu0 0
        %801 = vmatpush1.bf16.msra.mxu0 0
        %802 = vmatprep.subr.bf16.mxu0 0
        %803 = vmatpush1.bf16.msra.mxu0 0
        %804 = vmatprep.subr.bf16.mxu0 0
        %805 = vmatpush1.bf16.msra.mxu0 0
        %806 = vmatprep.subr.bf16.mxu0 0
        %807 = vmatpush1.bf16.msra.mxu0 0
        %808 = vmatprep.subr.bf16.mxu0 0
        %809 = vmatpush1.bf16.msra.mxu0 0
        %810 = vmatprep.subr.bf16.mxu0 0
        %811 = vmatpush1.bf16.msra.mxu0 0
        %812 = vmatprep.subr.bf16.mxu0 0
        %813 = vmatpush1.bf16.msra.mxu0 0
        %814 = vmatprep.mubr.bf16.mxu0 0
        %815 = vmatmul.mubr.bf16.gmra.mrb[0].mxu0 %v777
        %v816 = vpop.f32.mrb[0].mxu0
        %v817 = vadd.f32 0.0, %v816
        %v818 = vpop.f32.mrb[0].mxu0
        %v819 = vpop.f32.mrb[0].mxu0
        %v820 = vadd.f32 0.0, %v819
        %v821 = vpop.f32.mrb[0].mxu0
        %822 = vdwg.mxu0
        %v823 = vadd.f32 %v768, %v817
        %v824 = vadd.f32 %v769, %v820
        %825 = vst.msk [vmem:[#allocation2] sm:$0xff] %vm373, %v823
        %826 = vst.msk [vmem:[#allocation2 + $0x8] sm:$0xff] %vm373, %v824
        %p827 = scmp.eq.s32.totalorder %s25, 3
        // Predicated region
        $region49: #{tpu_custom_call.1} parent=43 // pred_check
          %p828 = pneg %p827
        $region50: #{tpu_custom_call.1} parent=43 // pred_check_branch
          %830 = sbr.rel (%p828) target = $region52
        $region51: #{tpu_custom_call.1} parent=43 // pred_region
          %v831 = vld [vmem:[#allocation2] sm:$0xff]
          %v832 = vld [vmem:[#allocation2 + $0x8] sm:$0xff]
          %v833 = vld [vmem:[%s5] sm:$0x1]
          %v835 = vlaneseq
          %v836 = vshrl.u32 %v835, 7
          %v837 = vsub.s32 0, %v836
          %v838 = vrot.slane %v833, %v837
          %v840 = vadd.f32 %v831, %v838
          %v841 = vadd.f32 %v832, %v838
          %842 = vst.msk [vmem:[%s315] sm:$0xff] %vm373, %v840
          %843 = vst.msk [vmem:[%s315 + $0x8] sm:$0xff] %vm373, %v841
        $region52: #{tpu_custom_call.1} parent=43 // pred_fallthru
          _
        %s844 = sand.u32 %s191, 1
        %s845 = scalar_lea.sflag [#allocation4], %s844
        %s846 = sand.u32 %s191, 1
        %s847 = smul.addr %s846, 16
        %s848 = scalar_lea.vmem [#allocation3], %s847
        // Predicated region
        $region53: #{tpu_custom_call.1} parent=43 // pred_check
          %p849 = pneg %p201
        $region54: #{tpu_custom_call.1} parent=43 // pred_check_branch
          %851 = sbr.rel (%p849) target = $region56
        $region55: #{tpu_custom_call.1} parent=43 // pred_region
          %s852 = smul.u32 2, %s24
          %s854 = ssub.s32 256, 256
          %855 = vsyncadd %s845, %s854
          %s856 = smul.addr %s852, 128
          %s857 = scalar_lea.hbm %s6, %s856
          %s858 = sshll.u32 %s848, 4
          %s859 = int_to_ptr.vmem [resolvable:$true] %s858
          %864 = dma.vmem_to_hbm [thread:$0]  %s859, 256, %s857, %s845, 128, 128, 8
        $region56: #{tpu_custom_call.1} parent=43 // pred_fallthru
          _
      $region44: #{tpu_custom_call.1} parent=5 // pred_fallthru
        _
      %p865 = scmp.le.s32.totalorder 2, %s15
      // Predicated region
      $region57: #{tpu_custom_call.1} parent=5 // pred_check
        %p866 = pneg %p865
      $region58: #{tpu_custom_call.1} parent=5 // pred_check_branch
        %868 = sbr.rel (%p866) target = $region60
      $region59: #{tpu_custom_call.1} parent=5 // pred_region
        %s869 = ssub.s32 %s15, 2
        // Predicated region
        $region61: #{tpu_custom_call.1} parent=59 // pred_check
          %p870 = pneg %p207
        $region62: #{tpu_custom_call.1} parent=59 // pred_check_branch
          %872 = sbr.rel (%p870) target = $region64
        $region63: #{tpu_custom_call.1} parent=59 // pred_region
          %s873 = sand.u32 %s192, 1
          %s874 = scalar_lea.sflag [#allocation4], %s873
          %s875 = sand.u32 %s192, 1
          %s876 = smul.addr %s875, 16
          %s877 = scalar_lea.vmem [#allocation3], %s876
          %878 = dma.done %s874, 256
        $region64: #{tpu_custom_call.1} parent=59 // pred_fallthru
          _
      $region60: #{tpu_custom_call.1} parent=5 // pred_fallthru
        _
    $region6: #{tpu_custom_call.1} parent=1 // loop_footer
      %s19 = sadd.s32 1, %s15
    $region7: #{tpu_custom_call.1} parent=1 // loop_footer_branch
      %14 = sbr.rel target = $region3
    $region8: #{tpu_custom_call.1} parent=1 // loop_exit
      _
    %879 = vsyncpa [#allocation4], 1
    %s880 = scalar_lea.sflag [#allocation4], 1
    %881 = vsyncpa %s880, 1

</llo_original>
